<compile_context>
chip_gen: v7x
topology: tpu7x:2x2x1
jax: 0.10.0
libtpu: 0.0.40
codegen_flags: <defaults>
</compile_context>

<pallas_src>
import functools

import jax
import jax.numpy as jnp
import numpy as np
from jax.experimental import pallas as pl
from jax.experimental.pallas import tpu as pltpu

EPS = 1e-5
VMEM_LIMIT = 32 * 1024 * 1024  # safe on v5e/v6e (128 MiB) and v7x (64 MiB)


# ----------------------------------------------------------------------------
# Pass 1: conv-as-matmul (lane-dense [Cout, TM] tiles) + global BN statistics.
# ----------------------------------------------------------------------------
def conv_stats_kernel(w_ref, p_ref, y_ref, stats_ref):
    # w_ref:     [Cout, Kpad]      flattened conv weight (Kdim zero-padded to 128)
    # p_ref:     [1, Kpad, TM]     im2col patch tile for batch n, spatial tile m
    # y_ref:     [1, Cout, TM]     conv output tile (f32, pre-BN)
    # stats_ref: [Cout, 2]         resident accumulator: col0 = sum, col1 = sumsq
    acc = jnp.dot(w_ref[...], p_ref[0], preferred_element_type=jnp.float32)
    y_ref[0] = acc

    @pl.when((pl.program_id(0) == 0) & (pl.program_id(1) == 0))
    def _():
        stats_ref[...] = jnp.zeros_like(stats_ref)

    s = jnp.sum(acc, axis=1, keepdims=True)          # [Cout, 1]
    ss = jnp.sum(acc * acc, axis=1, keepdims=True)   # [Cout, 1]
    stats_ref[...] = stats_ref[...] + jnp.concatenate([s, ss], axis=1)


# ----------------------------------------------------------------------------
# Pass 2: fold BN into a single per-channel scale/shift, apply + ReLU.
# ----------------------------------------------------------------------------
def bn_relu_kernel(stats_ref, gamma_ref, beta_ref, y_ref, o_ref, *, inv_cnt):
    stats = stats_ref[...]                           # [Cout, 2]
    mean = stats[:, 0:1] * inv_cnt                   # [Cout, 1]
    ex2 = stats[:, 1:2] * inv_cnt
    var = jnp.maximum(ex2 - mean * mean, 0.0)        # biased batch variance
    scale = gamma_ref[...] * jax.lax.rsqrt(var + EPS)
    shift = beta_ref[...] - mean * scale
    o_ref[0] = jnp.maximum(y_ref[0] * scale + shift, 0.0)


def _pick_tile(total, candidates=(2048, 1024, 512, 256, 128)):
    """Largest spatial tile (multiple of 128) dividing `total`, else full extent."""
    for t in candidates:
        if total % t == 0:
            return t
    return total  # full-extent block is always a legal block dim


def _im2col_t(x, K, stride, pad):
    """x: [N, C, H, W] -> patches [N, C*K*K, OH*OW] (c-major, matching OIHW flatten)."""
    N, C, H, W = x.shape
    xp = jnp.pad(x, ((0, 0), (0, 0), (pad, pad), (pad, pad)))
    OH = (H + 2 * pad - K) // stride + 1
    OW = (W + 2 * pad - K) // stride + 1
    cols = []
    for kh in range(K):
        for kw in range(K):
            cols.append(xp[:, :, kh:kh + stride * OH:stride, kw:kw + stride * OW:stride])
    patches = jnp.stack(cols, axis=2)                     # [N, C, K*K, OH, OW]
    patches = patches.reshape(N, C * K * K, OH * OW)      # pure reshape, no transpose
    return patches, OH, OW


def conv_module_forward(x, weight, gamma, beta, *, stride=1, padding=1,
                        compute_dtype=jnp.float32):
    """ConvModule forward: conv(no bias) -> BN(train stats) -> ReLU.

    x:      [N, Cin, H, W]   (NCHW, like PyTorch)
    weight: [Cout, Cin, KH, KW]
    gamma, beta: [Cout]
    compute_dtype: matmul input dtype (jnp.bfloat16 halves HBM traffic on
                   v5e/v6e/v7x; default f32 preserves exact f32 semantics).
    returns [N, Cout, OH, OW], float32
    """
    N, Cin, H, W = x.shape
    Cout, _, KH, KW = weight.shape
    assert KH == KW
    K = KH

    patches, OH, OW = _im2col_t(x, K, stride, padding)    # [N, Kdim, OHW]
    OHW = OH * OW
    Kdim = Cin * K * K
    Kpad = max(128, ((Kdim + 127) // 128) * 128)

    # Explicit zero-pad of the contraction dim to a lane-aligned 128 multiple.
    patches = jnp.pad(patches, ((0, 0), (0, Kpad - Kdim), (0, 0))).astype(compute_dtype)
    w2 = jnp.pad(weight.reshape(Cout, Kdim), ((0, 0), (0, Kpad - Kdim))).astype(compute_dtype)
    gamma2 = gamma.reshape(Cout, 1).astype(jnp.float32)
    beta2 = beta.reshape(Cout, 1).astype(jnp.float32)

    TM = _pick_tile(OHW)
    MT = OHW // TM

    # ---- Pass 1: conv + global sum/sumsq (stats block resident across grid) ----
    y, stats = pl.pallas_call(
        conv_stats_kernel,
        out_shape=(jax.ShapeDtypeStruct((N, Cout, OHW), jnp.float32),
                   jax.ShapeDtypeStruct((Cout, 2), jnp.float32)),
        grid_spec=pltpu.PrefetchScalarGridSpec(
            num_scalar_prefetch=0,
            grid=(N, MT),
            in_specs=[
                pl.BlockSpec((Cout, Kpad), lambda n, m: (0, 0)),
                pl.BlockSpec((1, Kpad, TM), lambda n, m: (n, 0, m)),
            ],
            out_specs=[
                pl.BlockSpec((1, Cout, TM), lambda n, m: (n, 0, m)),
                pl.BlockSpec((Cout, 2), lambda n, m: (0, 0)),
            ],
        ),
        compiler_params=pltpu.CompilerParams(
            dimension_semantics=("arbitrary", "arbitrary"),
            vmem_limit_bytes=VMEM_LIMIT),
    )(w2, patches)

    # ---- Pass 2: per-channel scale/shift + ReLU (fully parallel over tiles) ----
    inv_cnt = 1.0 / float(N * OHW)
    out = pl.pallas_call(
        functools.partial(bn_relu_kernel, inv_cnt=inv_cnt),
        out_shape=jax.ShapeDtypeStruct((N, Cout, OHW), jnp.float32),
        grid_spec=pltpu.PrefetchScalarGridSpec(
            num_scalar_prefetch=0,
            grid=(N, MT),
            in_specs=[
                pl.BlockSpec((Cout, 2), lambda n, m: (0, 0)),
                pl.BlockSpec((Cout, 1), lambda n, m: (0, 0)),
                pl.BlockSpec((Cout, 1), lambda n, m: (0, 0)),
                pl.BlockSpec((1, Cout, TM), lambda n, m: (n, 0, m)),
            ],
            out_specs=pl.BlockSpec((1, Cout, TM), lambda n, m: (n, 0, m)),
        ),
        compiler_params=pltpu.CompilerParams(
            dimension_semantics=("parallel", "parallel"),
            vmem_limit_bytes=VMEM_LIMIT),
    )(stats, gamma2, beta2, y)

    # [N, Cout, OHW] reshapes directly to NCHW — no transpose needed.
    return out.reshape(N, Cout, OH, OW)


def _reference(x, weight, gamma, beta, *, stride=1, padding=1):
    """Pure-JAX reference: conv -> training-mode BN -> ReLU (f32)."""
    y = jax.lax.conv_general_dilated(
        x.astype(jnp.float32), weight.astype(jnp.float32),
        window_strides=(stride, stride),
        padding=[(padding, padding), (padding, padding)],
        dimension_numbers=('NCHW', 'OIHW', 'NCHW'))
    mean = jnp.mean(y, axis=(0, 2, 3), keepdims=True)
    var = jnp.mean((y - mean) ** 2, axis=(0, 2, 3), keepdims=True)
    y = (y - mean) * jax.lax.rsqrt(var + EPS)
    y = y * gamma.reshape(1, -1, 1, 1) + beta.reshape(1, -1, 1, 1)
    return jnp.maximum(y, 0.0)


if __name__ == "__main__":
    key = jax.random.PRNGKey(0)
    k_x, k_w = jax.random.split(key)

    N, Cin, H, W = 2, 4, 16, 16
    Cout, K, stride, pad = 8, 3, 1, 1

    x = jax.random.normal(k_x, (N, Cin, H, W), dtype=jnp.float32)

    # Deterministic parameter init mirroring ConvModule.init_weights():
    #   kaiming_normal_(nonlinearity='relu'): std = sqrt(2 / fan_in), fan_in = Cin*K*K
    fan_in = Cin * K * K
    w_std = float(np.sqrt(2.0 / fan_in))
    weight = jax.random.normal(k_w, (Cout, Cin, K, K), dtype=jnp.float32) * w_std
    #   constant_init(norm, 1, bias=0)
    gamma = jnp.ones((Cout,), dtype=jnp.float32)
    beta = jnp.zeros((Cout,), dtype=jnp.float32)

    out = conv_module_forward(x, weight, gamma, beta, stride=stride, padding=pad)
    out = jax.block_until_ready(out)

    ref = jax.block_until_ready(
        _reference(x, weight, gamma, beta, stride=stride, padding=pad))

    assert out.shape == (N, Cout, H, W), out.shape
    np.testing.assert_allclose(np.asarray(out), np.asarray(ref), rtol=1e-4, atol=1e-4)

    print("KERNEL_OK")
</pallas_src>

<mosaic_0001>
module attributes {stable_mosaic.version = 11 : i64} {
  func.func @conv_stats_kernel(%arg0: i32, %arg1: i32, %arg2: memref<8x128xf32, #tpu.memory_space<vmem>>, %arg3: memref<1x128x256xf32, #tpu.memory_space<vmem>>, %arg4: memref<1x8x256xf32, #tpu.memory_space<vmem>>, %arg5: memref<8x2xf32, #tpu.memory_space<vmem>>) attributes {dimension_semantics = [#tpu.dimension_semantics<arbitrary>, #tpu.dimension_semantics<arbitrary>], iteration_bounds = array<i64: 2, 1>, scalar_prefetch = 0 : i64, scratch_operands = 0 : i64, tpu.core_type = #tpu.core_type<tc>, window_params = [{pipeline_mode = #tpu.pipeline_mode<synchronous>, transform_indices = @transform_0, window_bounds = array<i64: 8, 128>}, {transform_indices = @transform_1, window_bounds = array<i64: 1, 128, 256>}, {transform_indices = @transform_2, window_bounds = array<i64: 1, 8, 256>}, {pipeline_mode = #tpu.pipeline_mode<synchronous>, transform_indices = @transform_3, window_bounds = array<i64: 8, 2>}]} {
    %c0 = arith.constant 0 : index
    %c0_0 = arith.constant 0 : index
    %0 = vector.load %arg2[%c0, %c0_0] : memref<8x128xf32, #tpu.memory_space<vmem>>, vector<8x128xf32>
    %c0_1 = arith.constant 0 : index
    %c0_2 = arith.constant 0 : index
    %c0_3 = arith.constant 0 : index
    %1 = vector.load %arg3[%c0_1, %c0_2, %c0_3] : memref<1x128x256xf32, #tpu.memory_space<vmem>>, vector<1x128x256xf32>
    %2 = vector.shape_cast %1 : vector<1x128x256xf32> to vector<128x256xf32>
    %cst = arith.constant dense<0.000000e+00> : vector<8x256xf32>
    %3 = tpu.matmul %0, %2, %cst {dimension_numbers = #tpu.dot_dimension_numbers<[1], [0], [0], [1], [0, 0, 1, 1], [], []>} : vector<8x128xf32>, vector<128x256xf32>, vector<8x256xf32> -> vector<8x256xf32>
    %c0_4 = arith.constant 0 : index
    %c0_5 = arith.constant 0 : index
    %c0_6 = arith.constant 0 : index
    %4 = vector.load %arg4[%c0_4, %c0_5, %c0_6] : memref<1x8x256xf32, #tpu.memory_space<vmem>>, vector<1x8x256xf32>
    %5 = vector.shape_cast %4 : vector<1x8x256xf32> to vector<8x256xf32>
    %6 = vector.shape_cast %3 : vector<8x256xf32> to vector<1x8x256xf32>
    tpu.vector_store %arg4[%c0_4, %c0_5, %c0_6], %6 {strides = array<i32>} : memref<1x8x256xf32, #tpu.memory_space<vmem>>, vector<1x8x256xf32>,
    %c0_i32 = arith.constant 0 : i32
    %7 = arith.cmpi eq, %arg0, %c0_i32 : i32
    %c0_i32_7 = arith.constant 0 : i32
    %8 = arith.cmpi eq, %arg1, %c0_i32_7 : i32
    %9 = arith.andi %7, %8 : i1
    %10 = arith.extui %9 : i1 to i32
    %c0_i32_8 = arith.constant 0 : i32
    %11 = arith.cmpi ne, %10, %c0_i32_8 : i32
    scf.if %11 {
      %cst_15 = arith.constant 0.000000e+00 : f32
      %21 = vector.broadcast %cst_15 : f32 to vector<8x2xf32>
      %c0_16 = arith.constant 0 : index
      %c0_17 = arith.constant 0 : index
      %22 = vector.load %arg5[%c0_16, %c0_17] : memref<8x2xf32, #tpu.memory_space<vmem>>, vector<8x2xf32>
      tpu.vector_store %arg5[%c0_16, %c0_17], %21 {strides = array<i32>} : memref<8x2xf32, #tpu.memory_space<vmem>>, vector<8x2xf32>,
    } else {
    }
    %cst_9 = arith.constant dense<0.000000e+00> : vector<8xf32>
    %12 = vector.multi_reduction <add>, %3, %cst_9 [1] : vector<8x256xf32> to vector<8xf32>
    %13 = vector.shape_cast %12 : vector<8xf32> to vector<8x1xf32>
    %14 = arith.mulf %3, %3 : vector<8x256xf32>
    %cst_10 = arith.constant dense<0.000000e+00> : vector<8xf32>
    %15 = vector.multi_reduction <add>, %14, %cst_10 [1] : vector<8x256xf32> to vector<8xf32>
    %16 = vector.shape_cast %15 : vector<8xf32> to vector<8x1xf32>
    %c0_11 = arith.constant 0 : index
    %c0_12 = arith.constant 0 : index
    %17 = vector.load %arg5[%c0_11, %c0_12] : memref<8x2xf32, #tpu.memory_space<vmem>>, vector<8x2xf32>
    %18 = tpu.concatenate %13, %16 in 1 : vector<8x1xf32>, vector<8x1xf32> -> vector<8x2xf32>
    %19 = arith.addf %17, %18 : vector<8x2xf32>
    %c0_13 = arith.constant 0 : index
    %c0_14 = arith.constant 0 : index
    %20 = vector.load %arg5[%c0_13, %c0_14] : memref<8x2xf32, #tpu.memory_space<vmem>>, vector<8x2xf32>
    tpu.vector_store %arg5[%c0_13, %c0_14], %19 {strides = array<i32>} : memref<8x2xf32, #tpu.memory_space<vmem>>, vector<8x2xf32>,
    return
  }
  func.func @transform_0(%arg0: i32, %arg1: i32) -> (i32, i32) {
    %c0_i32 = arith.constant 0 : i32
    %c0_i32_0 = arith.constant 0 : i32
    %c0_i32_1 = arith.constant 0 : i32
    return %c0_i32, %c0_i32_0 : i32, i32
  }
  func.func @transform_1(%arg0: i32, %arg1: i32) -> (i32, i32, i32) {
    %c0_i32 = arith.constant 0 : i32
    %c0_i32_0 = arith.constant 0 : i32
    return %arg0, %c0_i32, %arg1 : i32, i32, i32
  }
  func.func @transform_2(%arg0: i32, %arg1: i32) -> (i32, i32, i32) {
    %c0_i32 = arith.constant 0 : i32
    %c0_i32_0 = arith.constant 0 : i32
    return %arg0, %c0_i32, %arg1 : i32, i32, i32
  }
  func.func @transform_3(%arg0: i32, %arg1: i32) -> (i32, i32) {
    %c0_i32 = arith.constant 0 : i32
    %c0_i32_0 = arith.constant 0 : i32
    %c0_i32_1 = arith.constant 0 : i32
    return %c0_i32, %c0_i32_0 : i32, i32
  }
}

</mosaic_0001>

<llo_original>
// kernel: tpu_custom_call.1
$region0: #{tpu_custom_call.1}
  #allocation0 [shape = 'u32[]', space=smem, size = 0x4, offset = 0x4, fixed_abs, tag = 'smem constant byte address 0x4 - core index']
  #allocation1 [shape = 'u32[144,128]{1,0:T(1,128)}', space=vmem, size = 0x12000, scoped, tag = 'internal scratch']
  %s0 = inlined_call_operand.hbm [shape: f32[8,128], index: 0, kind: input, shape index: {}]
  %s1 = inlined_call_operand.hbm [shape: f32[2,128,256], index: 1, kind: input, shape index: {}]
  %s2 = inlined_call_operand.hbm [shape: f32[2,8,256], index: 2, kind: output, shape index: {0}]
  %s3 = inlined_call_operand.vmem [shape: f32[8,2], index: 3, kind: output, shape index: {1}]
  %4 = xla_tuple %s2, %s3
  %s5 = sld [smem:[#allocation0]]
  $region61: #{tpu_custom_call.1} parent=0
    _
  %s7 = ssub.s32 1, %s5
  %s8 = scalar_select 0, %s7, %s5
  $region1: #{tpu_custom_call.1} parent=0
    #allocation2 [shape = 'u8[4096]{0}', space=vmem, size = 0x1000, scoped, tag = 'input window, operand 0, single buffered']
    #allocation3 [shape = 's32[2]{0}', space=sflag, size = 0x8, scoped, tag = 'scoped memory for tpu_custom_call.1']
    #allocation4 [shape = 's32[2]{0}', space=sflag, size = 0x8, scoped, tag = 'scoped memory for tpu_custom_call.1']
    #allocation5 [shape = 'u8[262144]{0}', space=vmem, size = 0x40000, scoped, tag = 'input window, operand 1']
    #allocation6 [shape = 's32[2]{0}', space=sflag, size = 0x8, scoped, tag = 'scoped memory for tpu_custom_call.1']
    #allocation7 [shape = 'u8[16384]{0}', space=vmem, size = 0x4000, scoped, tag = 'output window, operand 0']
    %9 = vsyncpa [#allocation3], 0
    %10 = vsyncpa [#allocation6], 0
    %s11 = scalar_lea.sflag [#allocation6], 1
    %12 = vsyncpa %s11, 0
    %13 = vsyncpa [#allocation4], 0
    %s14 = scalar_lea.sflag [#allocation4], 1
    %15 = vsyncpa %s14, 0
    loop: start=0, step=1, limit=4
    $region2: #{tpu_custom_call.1} parent=1 // loop_pre_header
      _
    $region3: #{tpu_custom_call.1} parent=1 // loop_header
      %s17 = sphi 0, %s21
      %p18 = scmp.ge.s32.totalorder %s17, 4
      %s24 = sphi 0, %s36
      %s25 = sphi 0, %s32
      %s26 = sphi 0, %s24
      %s27 = sphi 0, %s25
      %s28 = sphi 0, %s26
      %s29 = sphi 0, %s27
      %s37 = sphi 0, %s37
      %s39 = sphi 0, %s37
      %s40 = sphi 0, %s39
      %s54 = sphi 0, %s40
      %s62 = sphi 0, %s64
      %s65 = sphi 0, %s62
      %s66 = sphi 0, %s65
      %s82 = sphi 0, %s66
      %s90 = sphi 0, %s92
      %s93 = sphi 0, %s90
      %s94 = sphi 0, %s93
      %s110 = sphi 0, %s94
      %s114 = sphi 0, %s114
      %s116 = sphi 0, %s114
      %s117 = sphi 0, %s116
      %s131 = sphi 0, %s117
    $region4: #{tpu_custom_call.1} parent=1 // loop_header_branch
      %20 = sbr.rel (%p18) target = $region8
    $region5: #{tpu_custom_call.1} parent=1 // loop_body
      %s22 = ssub.s32 %s17, 1
      %s23 = ssub.s32 %s17, 2
      %s30 = sadd.s32 1, %s25
      %p31 = scmp.ge.s32.totalorder %s30, 1
      %s32 = scalar_select %p31, 0, %s30
      %s33 = sadd.s32 1, %s24
      %s34 = scalar_select %p31, %s33, %s24
      %p35 = scmp.ge.s32.totalorder %s34, 2
      %s36 = scalar_select %p35, 0, %s34
      %s38 = sadd.s32 %s37, 1
      %p41 = scmp.eq.s32.totalorder %s17, 1
      %p42 = scmp.ne.s32.totalorder %s37, %s39
      %p43 = scmp.eq.s32.totalorder %s17, 0
      %p44 = por %p42, %p43
      %p45 = scmp.ne.s32.totalorder %s37, %s39
      %p46 = scmp.eq.s32.totalorder %s22, 1
      %p47 = por %p45, %p46
      %p48 = scmp.ne.s32.totalorder %s39, %s40
      %p49 = scmp.eq.s32.totalorder %s22, 0
      %p50 = por %p48, %p49
      %p51 = scmp.ne.s32.totalorder %s39, %s40
      %p52 = scmp.eq.s32.totalorder %s23, 1
      %p53 = por %p51, %p52
      %p55 = scmp.ne.s32.totalorder %s40, %s54
      %p56 = scmp.eq.s32.totalorder %s23, 0
      %p57 = por %p55, %p56
      %s58 = ssub.s32 %s24, %s36
      %s59 = ssub.s32 %s25, %s32
      %s60 = sor.u32 %s58, %s59
      %p61 = scmp.eq.s32.totalorder %s60, 0
      %s63 = sadd.s32 %s62, 1
      %s64 = scalar_select %p61, %s62, %s63
      %p67 = pneg %p61
      %p68 = scmp.eq.s32.totalorder %s17, 1
      %p69 = por %p67, %p68
      %p70 = scmp.ne.s32.totalorder %s62, %s65
      %p71 = scmp.eq.s32.totalorder %s17, 0
      %p72 = por %p70, %p71
      %p73 = scmp.ne.s32.totalorder %s62, %s65
      %p74 = scmp.eq.s32.totalorder %s22, 1
      %p75 = por %p73, %p74
      %p76 = scmp.ne.s32.totalorder %s65, %s66
      %p77 = scmp.eq.s32.totalorder %s22, 0
      %p78 = por %p76, %p77
      %p79 = scmp.ne.s32.totalorder %s65, %s66
      %p80 = scmp.eq.s32.totalorder %s23, 1
      %p81 = por %p79, %p80
      %p83 = scmp.ne.s32.totalorder %s66, %s82
      %p84 = scmp.eq.s32.totalorder %s23, 0
      %p85 = por %p83, %p84
      %s86 = ssub.s32 %s24, %s36
      %s87 = ssub.s32 %s25, %s32
      %s88 = sor.u32 %s86, %s87
      %p89 = scmp.eq.s32.totalorder %s88, 0
      %s91 = sadd.s32 %s90, 1
      %s92 = scalar_select %p89, %s90, %s91
      %p95 = pneg %p89
      %p96 = scmp.eq.s32.totalorder %s17, 1
      %p97 = por %p95, %p96
      %p98 = scmp.ne.s32.totalorder %s90, %s93
      %p99 = scmp.eq.s32.totalorder %s17, 0
      %p100 = por %p98, %p99
      %p101 = scmp.ne.s32.totalorder %s90, %s93
      %p102 = scmp.eq.s32.totalorder %s22, 1
      %p103 = por %p101, %p102
      %p104 = scmp.ne.s32.totalorder %s93, %s94
      %p105 = scmp.eq.s32.totalorder %s22, 0
      %p106 = por %p104, %p105
      %p107 = scmp.ne.s32.totalorder %s93, %s94
      %p108 = scmp.eq.s32.totalorder %s23, 1
      %p109 = por %p107, %p108
      %p111 = scmp.ne.s32.totalorder %s94, %s110
      %p112 = scmp.eq.s32.totalorder %s23, 0
      %p113 = por %p111, %p112
      %s115 = sadd.s32 %s114, 1
      %p118 = scmp.eq.s32.totalorder %s17, 1
      %p119 = scmp.ne.s32.totalorder %s114, %s116
      %p120 = scmp.eq.s32.totalorder %s17, 0
      %p121 = por %p119, %p120
      %p122 = scmp.ne.s32.totalorder %s114, %s116
      %p123 = scmp.eq.s32.totalorder %s22, 1
      %p124 = por %p122, %p123
      %p125 = scmp.ne.s32.totalorder %s116, %s117
      %p126 = scmp.eq.s32.totalorder %s22, 0
      %p127 = por %p125, %p126
      %p128 = scmp.ne.s32.totalorder %s116, %s117
      %p129 = scmp.eq.s32.totalorder %s23, 1
      %p130 = por %p128, %p129
      %p132 = scmp.ne.s32.totalorder %s117, %s131
      %p133 = scmp.eq.s32.totalorder %s23, 0
      %p134 = por %p132, %p133
      %p135 = scmp.le.s32.totalorder 1, %s17
      %p136 = scmp.lt.s32.totalorder %s17, 3
      %p137 = pnand %p135, %p136
      %p138 = pneg %p137
      // Predicated region
      $region9: #{tpu_custom_call.1} parent=5 // pred_check
        _
      $region10: #{tpu_custom_call.1} parent=5 // pred_check_branch
        %140 = sbr.rel (%p137) target = $region12
      $region11: #{tpu_custom_call.1} parent=5 // pred_region
        %s141 = ssub.s32 %s17, 1
        // Predicated region
        $region13: #{tpu_custom_call.1} parent=11 // pred_check
          %p142 = pneg %p50
        $region14: #{tpu_custom_call.1} parent=11 // pred_check_branch
          %144 = sbr.rel (%p142) target = $region16
        $region15: #{tpu_custom_call.1} parent=11 // pred_region
          %s146 = ssub.s32 128, 128
          %147 = vsyncadd [#allocation3], %s146
          %s149 = sshll.u32 [#allocation2], 4
          %s150 = int_to_ptr.vmem [resolvable:$true] %s149
          %152 = dma.hbm_to_vmem [thread:$0]  %s0, 128, %s150, [#allocation3]
        $region16: #{tpu_custom_call.1} parent=11 // pred_fallthru
          _
      $region12: #{tpu_custom_call.1} parent=5 // pred_fallthru
        _
      %p153 = scmp.lt.s32.totalorder %s17, 2
      // Predicated region
      $region17: #{tpu_custom_call.1} parent=5 // pred_check
        %p154 = pneg %p153
      $region18: #{tpu_custom_call.1} parent=5 // pred_check_branch
        %156 = sbr.rel (%p154) target = $region20
      $region19: #{tpu_custom_call.1} parent=5 // pred_region
        // Predicated region
        $region21: #{tpu_custom_call.1} parent=19 // pred_check
          %p157 = pneg %p72
        $region22: #{tpu_custom_call.1} parent=19 // pred_check_branch
          %159 = sbr.rel (%p157) target = $region24
        $region23: #{tpu_custom_call.1} parent=19 // pred_region
          %s160 = sand.u32 %s62, 1
          %s161 = scalar_lea.sflag [#allocation6], %s160
          %s162 = sand.u32 %s62, 1
          %s163 = smul.addr %s162, 256
          %s164 = scalar_lea.vmem [#allocation5], %s163
          %s165 = smul.u32 2, %s25
          %s167 = ssub.s32 4096, 4096
          %168 = vsyncadd %s161, %s167
          %s169 = smul.addr %s24, 32
          %s170 = sadd.s32 %s165, %s169
          %s171 = smul.addr %s170, 128
          %s172 = scalar_lea.hbm %s1, %s171
          %s173 = sshll.u32 %s164, 4
          %s174 = int_to_ptr.vmem [resolvable:$true] %s173
          %179 = dma.hbm_to_vmem [thread:$0]  %s172, 4096, %s174, %s161, 256, 256, 16
        $region24: #{tpu_custom_call.1} parent=19 // pred_fallthru
          _
      $region20: #{tpu_custom_call.1} parent=5 // pred_fallthru
        _
      %p180 = scmp.le.s32.totalorder 1, %s17
      %p181 = scmp.lt.s32.totalorder %s17, 3
      %p182 = pnand %p180, %p181
      %p183 = pneg %p182
      // Predicated region
      $region25: #{tpu_custom_call.1} parent=5 // pred_check
        _
      $region26: #{tpu_custom_call.1} parent=5 // pred_check_branch
        %185 = sbr.rel (%p182) target = $region28
      $region27: #{tpu_custom_call.1} parent=5 // pred_region
        %s186 = ssub.s32 %s17, 1
        // Predicated region
        $region29: #{tpu_custom_call.1} parent=27 // pred_check
          %p187 = pneg %p50
        $region30: #{tpu_custom_call.1} parent=27 // pred_check_branch
          %189 = sbr.rel (%p187) target = $region32
        $region31: #{tpu_custom_call.1} parent=27 // pred_region
          %190 = dma.done [#allocation3], 128
        $region32: #{tpu_custom_call.1} parent=27 // pred_fallthru
          _
        %s191 = sand.u32 %s65, 1
        %s192 = scalar_lea.sflag [#allocation6], %s191
        %s193 = sand.u32 %s65, 1
        %s194 = smul.addr %s193, 256
        %s195 = scalar_lea.vmem [#allocation5], %s194
        // Predicated region
        $region33: #{tpu_custom_call.1} parent=27 // pred_check
          %p196 = pneg %p78
        $region34: #{tpu_custom_call.1} parent=27 // pred_check_branch
          %198 = sbr.rel (%p196) target = $region36
        $region35: #{tpu_custom_call.1} parent=27 // pred_region
          %199 = dma.done %s192, 4096
        $region36: #{tpu_custom_call.1} parent=27 // pred_fallthru
          _
        %p200 = pneg %p50
        %p201 = pneg %p47
        %s202 = sand.u32 %s65, 1
        %s203 = scalar_lea.sflag [#allocation6], %s202
        %s204 = sand.u32 %s65, 1
        %s205 = smul.addr %s204, 256
        %s206 = scalar_lea.vmem [#allocation5], %s205
        %p207 = pneg %p78
        %p208 = pneg %p75
        %p209 = pneg %p106
        %p210 = pneg %p103
        %s211 = sand.u32 %s93, 1
        %s212 = scalar_lea.sflag [#allocation4], %s211
        %s213 = sand.u32 %s93, 1
        %s214 = smul.addr %s213, 16
        %s215 = scalar_lea.vmem [#allocation7], %s214
        %p216 = pneg %p127
        %p217 = pneg %p124
        %s218 = smul.u32 2, %s27
        %s219 = smul.u32 2, %s27
        %v220 = vld [vmem:[#allocation2] sm:$0xff]
        %v221 = vld [vmem:[%s195] sm:$0xff]
        %v222 = vld [vmem:[%s195 + $0x8] sm:$0xff]
        %v223 = vld [vmem:[%s195 + $0x10] sm:$0xff]
        %v224 = vld [vmem:[%s195 + $0x18] sm:$0xff]
        %v225 = vld [vmem:[%s195 + $0x20] sm:$0xff]
        %v226 = vld [vmem:[%s195 + $0x28] sm:$0xff]
        %v227 = vld [vmem:[%s195 + $0x30] sm:$0xff]
        %v228 = vld [vmem:[%s195 + $0x38] sm:$0xff]
        %v229 = vld [vmem:[%s195 + $0x40] sm:$0xff]
        %v230 = vld [vmem:[%s195 + $0x48] sm:$0xff]
        %v231 = vld [vmem:[%s195 + $0x50] sm:$0xff]
        %v232 = vld [vmem:[%s195 + $0x58] sm:$0xff]
        %v233 = vld [vmem:[%s195 + $0x60] sm:$0xff]
        %v234 = vld [vmem:[%s195 + $0x68] sm:$0xff]
        %v235 = vld [vmem:[%s195 + $0x70] sm:$0xff]
        %v236 = vld [vmem:[%s195 + $0x78] sm:$0xff]
        %v237 = vld [vmem:[%s195 + $0x80] sm:$0xff]
        %v238 = vld [vmem:[%s195 + $0x88] sm:$0xff]
        %v239 = vld [vmem:[%s195 + $0x90] sm:$0xff]
        %v240 = vld [vmem:[%s195 + $0x98] sm:$0xff]
        %v241 = vld [vmem:[%s195 + $0xa0] sm:$0xff]
        %v242 = vld [vmem:[%s195 + $0xa8] sm:$0xff]
        %v243 = vld [vmem:[%s195 + $0xb0] sm:$0xff]
        %v244 = vld [vmem:[%s195 + $0xb8] sm:$0xff]
        %v245 = vld [vmem:[%s195 + $0xc0] sm:$0xff]
        %v246 = vld [vmem:[%s195 + $0xc8] sm:$0xff]
        %v247 = vld [vmem:[%s195 + $0xd0] sm:$0xff]
        %v248 = vld [vmem:[%s195 + $0xd8] sm:$0xff]
        %v249 = vld [vmem:[%s195 + $0xe0] sm:$0xff]
        %v250 = vld [vmem:[%s195 + $0xe8] sm:$0xff]
        %v251 = vld [vmem:[%s195 + $0xf0] sm:$0xff]
        %v252 = vld [vmem:[%s195 + $0xf8] sm:$0xff]
        %253 = vmatprep.subr.mxu0 %v222
        %254 = vmatpush1.msra.mxu0 %v221
        %255 = vmatprep.subr.mxu0 %v224
        %256 = vmatpush1.msra.mxu0 %v223
        %257 = vmatprep.subr.mxu0 %v226
        %258 = vmatpush1.msra.mxu0 %v225
        %259 = vmatprep.subr.mxu0 %v228
        %260 = vmatpush1.msra.mxu0 %v227
        %261 = vmatprep.subr.mxu0 %v230
        %262 = vmatpush1.msra.mxu0 %v229
        %263 = vmatprep.subr.mxu0 %v232
        %264 = vmatpush1.msra.mxu0 %v231
        %265 = vmatprep.subr.mxu0 %v234
        %266 = vmatpush1.msra.mxu0 %v233
        %267 = vmatprep.subr.mxu0 %v236
        %268 = vmatpush1.msra.mxu0 %v235
        %269 = vmatprep.subr.mxu0 %v238
        %270 = vmatpush1.msra.mxu0 %v237
        %271 = vmatprep.subr.mxu0 %v240
        %272 = vmatpush1.msra.mxu0 %v239
        %273 = vmatprep.subr.mxu0 %v242
        %274 = vmatpush1.msra.mxu0 %v241
        %275 = vmatprep.subr.mxu0 %v244
        %276 = vmatpush1.msra.mxu0 %v243
        %277 = vmatprep.subr.mxu0 %v246
        %278 = vmatpush1.msra.mxu0 %v245
        %279 = vmatprep.subr.mxu0 %v248
        %280 = vmatpush1.msra.mxu0 %v247
        %281 = vmatprep.subr.mxu0 %v250
        %282 = vmatpush1.msra.mxu0 %v249
        %283 = vmatprep.subr.mxu0 %v252
        %284 = vmatpush1.msra.mxu0 %v251
        %285 = vmatprep.subr.mxu0 0.0
        %286 = vmatpush1.msra.mxu0 0.0
        %287 = vmatprep.subr.mxu0 0.0
        %288 = vmatpush1.msra.mxu0 0.0
        %289 = vmatprep.subr.mxu0 0.0
        %290 = vmatpush1.msra.mxu0 0.0
        %291 = vmatprep.subr.mxu0 0.0
        %292 = vmatpush1.msra.mxu0 0.0
        %293 = vmatprep.subr.mxu0 0.0
        %294 = vmatpush1.msra.mxu0 0.0
        %295 = vmatprep.subr.mxu0 0.0
        %296 = vmatpush1.msra.mxu0 0.0
        %297 = vmatprep.subr.mxu0 0.0
        %298 = vmatpush1.msra.mxu0 0.0
        %299 = vmatprep.subr.mxu0 0.0
        %300 = vmatpush1.msra.mxu0 0.0
        %301 = vmatprep.subr.mxu0 0.0
        %302 = vmatpush1.msra.mxu0 0.0
        %303 = vmatprep.subr.mxu0 0.0
        %304 = vmatpush1.msra.mxu0 0.0
        %305 = vmatprep.subr.mxu0 0.0
        %306 = vmatpush1.msra.mxu0 0.0
        %307 = vmatprep.subr.mxu0 0.0
        %308 = vmatpush1.msra.mxu0 0.0
        %309 = vmatprep.subr.mxu0 0.0
        %310 = vmatpush1.msra.mxu0 0.0
        %311 = vmatprep.subr.mxu0 0.0
        %312 = vmatpush1.msra.mxu0 0.0
        %313 = vmatprep.subr.mxu0 0.0
        %314 = vmatpush1.msra.mxu0 0.0
        %315 = vmatprep.subr.mxu0 0.0
        %316 = vmatpush1.msra.mxu0 0.0
        %317 = vmatprep.mubr.f32.mxu0 0.0
        %318 = vmatmul.mubr.f32.gmra.mrb[0].mxu0 %v220
        %v319 = vpop.f32.mrb[0].mxu0
        %v320 = vadd.f32 0.0, %v319
        %v321 = vpop.f32.mrb[0].mxu0
        %v322 = vadd.f32 0.0, %v321
        %323 = vdwg.mxu0
        %324 = vst [vmem:[%s215] sm:$0xff] %v320
        %325 = vst [vmem:[%s215 + $0x8] sm:$0xff] %v322
        %p326 = scmp.eq.s32.totalorder %s26, 0
        %p327 = scmp.eq.s32.totalorder %s27, 0
        %p328 = pnand %p326, %p327
        %p329 = pneg %p328
        // Predicated region
        $region37: #{tpu_custom_call.1} parent=27 // pred_check
          _
        $region38: #{tpu_custom_call.1} parent=27 // pred_check_branch
          %331 = sbr.rel (%p328) target = $region40
        $region39: #{tpu_custom_call.1} parent=27 // pred_region
          %vm332 = vcmask 15360
          %333 = vst.msk [vmem:[%s3] sm:$0xff] %vm332, 0.0
        $region40: #{tpu_custom_call.1} parent=27 // pred_fallthru
          _
        %v334 = vadd.f32 %v320, %v322
        %335 = vadd.xlane.f32.xlu0 %v334
        %v336 = vpop.xlane.xlu0 %335
        %v337 = vmul.f32 %v320, %v320
        %v338 = vmul.f32 %v322, %v322
        %v339 = vadd.f32 %v337, %v338
        %340 = vadd.xlane.f32.xlu0 %v339
        %v341 = vpop.xlane.xlu0 %340
        %v342 = vld [vmem:[%s3] sm:$0xff]
        %vm343 = vcmask 7168
        %v344 = vsel %vm343, %v336, %v341
        %v345 = vadd.f32 %v342, %v344
        %vm346 = vcmask 15360
        %347 = vst.msk [vmem:[%s3] sm:$0xff] %vm346, %v345
        %s348 = sand.u32 %s93, 1
        %s349 = scalar_lea.sflag [#allocation4], %s348
        %s350 = sand.u32 %s93, 1
        %s351 = smul.addr %s350, 16
        %s352 = scalar_lea.vmem [#allocation7], %s351
        // Predicated region
        $region41: #{tpu_custom_call.1} parent=27 // pred_check
          %p353 = pneg %p103
        $region42: #{tpu_custom_call.1} parent=27 // pred_check_branch
          %355 = sbr.rel (%p353) target = $region44
        $region43: #{tpu_custom_call.1} parent=27 // pred_region
          %s356 = smul.u32 2, %s27
          %s358 = ssub.s32 256, 256
          %359 = vsyncadd %s349, %s358
          %s360 = smul.addr %s26, 2
          %s361 = sadd.s32 %s356, %s360
          %s362 = smul.addr %s361, 128
          %s363 = scalar_lea.hbm %s2, %s362
          %s365 = sshll.u32 %s352, 4
          %s366 = int_to_ptr.vmem [resolvable:$true] %s365
          %368 = dma.vmem_to_hbm [thread:$0]  %s366, 256, %s363, %s349
        $region44: #{tpu_custom_call.1} parent=27 // pred_fallthru
          _
        // Predicated region
        $region45: #{tpu_custom_call.1} parent=27 // pred_check
          %p369 = pneg %p124
        $region46: #{tpu_custom_call.1} parent=27 // pred_check_branch
          %371 = sbr.rel (%p369) target = $region48
        $region47: #{tpu_custom_call.1} parent=27 // pred_region
          _
        $region48: #{tpu_custom_call.1} parent=27 // pred_fallthru
          _
        // Predicated region
        $region49: #{tpu_custom_call.1} parent=27 // pred_check
          %p372 = pneg %p124
        $region50: #{tpu_custom_call.1} parent=27 // pred_check_branch
          %374 = sbr.rel (%p372) target = $region52
        $region51: #{tpu_custom_call.1} parent=27 // pred_region
          _
        $region52: #{tpu_custom_call.1} parent=27 // pred_fallthru
          _
      $region28: #{tpu_custom_call.1} parent=5 // pred_fallthru
        _
      %p375 = scmp.le.s32.totalorder 2, %s17
      // Predicated region
      $region53: #{tpu_custom_call.1} parent=5 // pred_check
        %p376 = pneg %p375
      $region54: #{tpu_custom_call.1} parent=5 // pred_check_branch
        %378 = sbr.rel (%p376) target = $region56
      $region55: #{tpu_custom_call.1} parent=5 // pred_region
        %s379 = ssub.s32 %s17, 2
        // Predicated region
        $region57: #{tpu_custom_call.1} parent=55 // pred_check
          %p380 = pneg %p109
        $region58: #{tpu_custom_call.1} parent=55 // pred_check_branch
          %382 = sbr.rel (%p380) target = $region60
        $region59: #{tpu_custom_call.1} parent=55 // pred_region
          %s383 = sand.u32 %s94, 1
          %s384 = scalar_lea.sflag [#allocation4], %s383
          %s385 = sand.u32 %s94, 1
          %s386 = smul.addr %s385, 16
          %s387 = scalar_lea.vmem [#allocation7], %s386
          %388 = dma.done %s384, 256
        $region60: #{tpu_custom_call.1} parent=55 // pred_fallthru
          _
      $region56: #{tpu_custom_call.1} parent=5 // pred_fallthru
        _
    $region6: #{tpu_custom_call.1} parent=1 // loop_footer
      %s21 = sadd.s32 1, %s17
    $region7: #{tpu_custom_call.1} parent=1 // loop_footer_branch
      %16 = sbr.rel target = $region3
    $region8: #{tpu_custom_call.1} parent=1 // loop_exit
      _
    %389 = vsyncpa [#allocation3], 1
    %s390 = scalar_lea.sflag [#allocation3], 1
    %391 = vsyncpa %s390, 1
    %392 = vsyncpa [#allocation6], 1
    %s393 = scalar_lea.sflag [#allocation6], 1
    %394 = vsyncpa %s393, 1
    %395 = vsyncpa [#allocation4], 1
    %s396 = scalar_lea.sflag [#allocation4], 1
    %397 = vsyncpa %s396, 1

</llo_original>
